<compile_context>
chip_gen: v7x
topology: tpu7x:2x2x1
jax: 0.10.0
libtpu: 0.0.40
codegen_flags: <defaults>
</compile_context>

<pallas_src>
import functools

import jax
import jax.numpy as jnp
from jax.experimental import pallas as pl
from jax.experimental.pallas import tpu as pltpu


def _round_up(x, m):
    return ((x + m - 1) // m) * m


def _cdiv(a, b):
    return -(-a // b)


# Graphs whose padded node count fits this bound run the fused single-call
# path (A_hat resident in VMEM, H never leaves VMEM).  2048 -> A bf16 = 8 MiB,
# comfortably under the scoped-VMEM limit even on v7x (64 MiB physical).
_FUSED_MAX_N = 2048

# Keep the (lane-dense) XW operand fully VMEM-resident when its lane-padded,
# buffered footprint fits; otherwise stream (tk, f_out) row blocks per k step.
_XW_RESIDENT_MAX_BYTES = 6 * 1024 * 1024

_VMEM_LIMIT = 40 * 1024 * 1024


@functools.lru_cache(maxsize=1)
def _default_tk():
    """Contraction-tile target for the streamed-A path.

    Per-generation guidance: ~1-2K on v5e/v6e, ~4K on v7x whose 3.2 TB/s HBM
    needs bigger tiles to beat the ~0.35us/step grid overhead.  Detection is
    best-effort; any failure falls back to 2048 (good everywhere).
    """
    try:
        vmem = pltpu.get_tpu_info().vmem_capacity_bytes
        if vmem <= 64 * 1024 * 1024:        # v7x-class (64 MiB VMEM per TC)
            return 4096
    except Exception:
        pass
    return 2048


def _auto_tiles(n):
    """(TM, TK) for the streamed-A (large graph) path."""
    n128 = _round_up(max(n, 128), 128)
    tk_target = _default_tk()
    k_blocks = max(1, _cdiv(n128, tk_target))
    tk = _round_up(_cdiv(n128, k_blocks), 128)   # balanced K blocks, pad < 128/blk
    tm = min(512 if n128 >= 4096 else 256, n128)
    return tm, tk


def _a_tile_spec(tm, tk):
    """(tm, tk) A_hat tile; triple-buffered when the JAX version supports it."""
    idx = lambda i, k: (i, k)
    try:
        return pl.BlockSpec((tm, tk), idx, pipeline_mode=pl.Buffered(3))
    except Exception:               # pl.Buffered / pipeline_mode unavailable
        return pl.BlockSpec((tm, tk), idx)


# ---------------------------------------------------------------------------
# Tiled (streamed-A) aggregation kernel:  O = A @ XW + b  (optional ReLU)
# ---------------------------------------------------------------------------
def _agg_kernel(a_ref, xw_ref, b_ref, o_ref, acc_ref, *, relu, tk, xw_resident):
    """One grid step of  O[i] = sum_k A[i,k] @ XW[k]  (+ b, optional ReLU)."""
    k = pl.program_id(1)

    @pl.when(k == 0)
    def _():
        acc_ref[...] = jnp.zeros_like(acc_ref)

    if xw_resident:
        start = pl.multiple_of(k * tk, tk)
        xw_blk = xw_ref[pl.ds(start, tk), :]
    else:
        xw_blk = xw_ref[...]

    acc_ref[...] += jnp.dot(a_ref[...], xw_blk,
                            preferred_element_type=jnp.float32)

    @pl.when(k == pl.num_programs(1) - 1)
    def _():
        r = acc_ref[...] + b_ref[...]
        if relu:
            r = jnp.maximum(r, 0.0)
        o_ref[...] = r.astype(o_ref.dtype)


def _aggregate(a, xw, b, *, relu, tm, tk, out_dtype):
    """Tiled  A @ XW + b  (optionally ReLU'd);  A streams in (tm, tk) tiles.

    a : [n_m, n_k] bf16 (zero-padded rows/cols are inert)
    xw: [n_k, f_out] bf16 (already projected, lane-dense)
    b : [1, f_out] f32
    """
    n_m, n_k = a.shape
    f_out = xw.shape[1]
    grid = (n_m // tm, n_k // tk)

    # Lane-padded, double-buffered footprint (a (n_k, 64) block still occupies
    # 128 lanes in VMEM).
    f_lanes = _round_up(f_out, 128)
    xw_resident = 2 * n_k * f_lanes * xw.dtype.itemsize <= _XW_RESIDENT_MAX_BYTES
    if xw_resident:
        xw_spec = pl.BlockSpec((n_k, f_out), lambda i, k: (0, 0))    # resident
    else:
        xw_spec = pl.BlockSpec((tk, f_out), lambda i, k: (k, 0))     # streamed

    flops = 2 * n_m * n_k * f_out
    bytes_accessed = (n_m * n_k * a.dtype.itemsize
                      + n_k * f_out * xw.dtype.itemsize
                      * (1 if xw_resident else grid[0])
                      + f_out * 4
                      + n_m * f_out * jnp.dtype(out_dtype).itemsize)

    kernel = functools.partial(_agg_kernel, relu=relu, tk=tk,
                               xw_resident=xw_resident)

    return pl.pallas_call(
        kernel,
        out_shape=jax.ShapeDtypeStruct((n_m, f_out), out_dtype),
        grid_spec=pltpu.PrefetchScalarGridSpec(
            num_scalar_prefetch=0,
            grid=grid,
            in_specs=[
                _a_tile_spec(tm, tk),                               # A stream
                xw_spec,                                            # XW
                pl.BlockSpec((1, f_out), lambda i, k: (0, 0)),      # bias
            ],
            out_specs=pl.BlockSpec((tm, f_out), lambda i, k: (i, 0)),
            scratch_shapes=[pltpu.VMEM((tm, f_out), jnp.float32)],
        ),
        compiler_params=pltpu.CompilerParams(
            dimension_semantics=("parallel", "arbitrary"),
            vmem_limit_bytes=_VMEM_LIMIT,
        ),
        cost_estimate=pl.CostEstimate(flops=flops, transcendentals=0,
                                      bytes_accessed=bytes_accessed),
    )(a, xw, b)


# ---------------------------------------------------------------------------
# Fused 2-layer kernel for graphs whose A_hat fits VMEM (A read once, H stays
# on-chip, single launch).
# ---------------------------------------------------------------------------
def _fused_kernel(a_ref, xw1_ref, b1_ref, w2_ref, b2_ref, o_ref):
    a = a_ref[...]
    h = jnp.dot(a, xw1_ref[...], preferred_element_type=jnp.float32)
    h = jnp.maximum(h + b1_ref[...], 0.0).astype(jnp.bfloat16)
    hw2 = jnp.dot(h, w2_ref[...], preferred_element_type=jnp.float32)
    out = jnp.dot(a, hw2.astype(jnp.bfloat16),
                  preferred_element_type=jnp.float32) + b2_ref[...]
    o_ref[...] = out


def _fused_forward(a, xw1, b1, w2, b2):
    n_pad = a.shape[0]
    hidden = xw1.shape[1]
    f_out_p = w2.shape[1]
    flops = (2 * n_pad * n_pad * (hidden + f_out_p)
             + 2 * n_pad * hidden * f_out_p)
    bytes_accessed = (n_pad * n_pad * 2 + n_pad * hidden * 2
                      + hidden * f_out_p * 2 + (hidden + f_out_p) * 4
                      + n_pad * f_out_p * 4)
    return pl.pallas_call(
        _fused_kernel,
        out_shape=jax.ShapeDtypeStruct((n_pad, f_out_p), jnp.float32),
        compiler_params=pltpu.CompilerParams(vmem_limit_bytes=_VMEM_LIMIT),
        cost_estimate=pl.CostEstimate(flops=flops, transcendentals=0,
                                      bytes_accessed=bytes_accessed),
    )(a, xw1, b1, w2, b2)


# ---------------------------------------------------------------------------
# Forward wrapper
# ---------------------------------------------------------------------------
@functools.partial(jax.jit, static_argnames=("tm", "tk"))
def gcn_forward(x, a_hat, w1, b1, w2, b2, *, tm=None, tk=None):
    """2-layer GCN forward:  relu(A@(X@W1)+b1) -> A@(H@W2)+b2."""
    n = x.shape[0]
    f_out = w2.shape[1]
    f_out_p = _round_up(f_out, 128)        # lane-dense final stores

    # Tiny dense projections hoisted out of the aggregation kernels; the
    # perf-critical kernels only ever see lane-dense, already-projected XW.
    xw1 = jnp.dot(x, w1, preferred_element_type=jnp.float32)        # [n, 64]
    w2_p = jnp.pad(w2, ((0, 0), (0, f_out_p - f_out)))
    b1_2d = b1.astype(jnp.float32)[None, :]
    b2_p = jnp.pad(b2, (0, f_out_p - f_out)).astype(jnp.float32)[None, :]

    use_fused = (tm is None and tk is None
                 and _round_up(n, 128) <= _FUSED_MAX_N)

    # TODO(synk): for repeated forwards on a static graph, precompute/cache the
    # padded bf16 A_hat (and batch fleets of tiny graphs block-diagonally)
    # instead of re-padding/casting it per call.
    if use_fused:
        n_pad = _round_up(n, 128)
        a_p = jnp.pad(a_hat, ((0, n_pad - n), (0, n_pad - n))).astype(jnp.bfloat16)
        xw1_p = jnp.pad(xw1, ((0, n_pad - n), (0, 0))).astype(jnp.bfloat16)
        out = _fused_forward(a_p, xw1_p, b1_2d,
                             w2_p.astype(jnp.bfloat16), b2_p)
        return out[:n, :f_out]

    # Streamed-A path for large graphs.
    atm, atk = _auto_tiles(n)
    tm = atm if tm is None else tm
    tk = atk if tk is None else tk
    n_m = _round_up(n, tm)                 # M and K axes padded independently
    n_k = _round_up(n, tk)

    a_p = jnp.pad(a_hat, ((0, n_m - n), (0, n_k - n))).astype(jnp.bfloat16)
    xw1_p = jnp.pad(xw1, ((0, n_k - n), (0, 0))).astype(jnp.bfloat16)

    # Layer 1:  H = relu(A @ XW1 + b1)     -> [n_m, 64] bf16
    h = _aggregate(a_p, xw1_p, b1_2d, relu=True, tm=tm, tk=tk,
                   out_dtype=jnp.bfloat16)

    # Layer 2 projection H @ W2 (tiny), re-shaped to the K axis.  Rows >= n
    # pair with zero columns of A, so their values are inert.
    hw2 = jnp.dot(h.astype(jnp.float32), w2_p,
                  preferred_element_type=jnp.float32)
    hw2 = hw2[:n_k] if n_k <= n_m else jnp.pad(hw2, ((0, n_k - n_m), (0, 0)))
    hw2 = hw2.astype(jnp.bfloat16)

    out = _aggregate(a_p, hw2, b2_p, relu=False, tm=tm, tk=tk,
                     out_dtype=jnp.float32)
    return out[:n, :f_out]


# ---------------------------------------------------------------------------
# Graph / reference utilities
# ---------------------------------------------------------------------------
def build_normalized_adjacency(edge_index, num_nodes):
    """Dense PyG-style gcn_norm:  D^{-1/2} (A + I) D^{-1/2}.

    Matches GCNConv's source->target flow: row i aggregates incoming edges
    (adj[dst, src]), duplicate edges scatter-add, self loops are only added
    for nodes that lack one.
    """
    src, dst = edge_index[0], edge_index[1]
    adj = jnp.zeros((num_nodes, num_nodes), jnp.float32)
    adj = adj.at[dst, src].add(1.0)
    diag = jnp.diagonal(adj)
    adj = adj + jnp.diag(jnp.where(diag > 0, 0.0, 1.0))
    deg = adj.sum(axis=1)
    d_inv_sqrt = jnp.where(deg > 0, jax.lax.rsqrt(deg), 0.0)
    return d_inv_sqrt[:, None] * adj * d_inv_sqrt[None, :]


def glorot(key, shape):
    fan_in, fan_out = shape
    limit = jnp.sqrt(6.0 / (fan_in + fan_out))
    return jax.random.uniform(key, shape, jnp.float32, -limit, limit)


def _make_graph(key, num_nodes, num_extra_edges, in_channels):
    k_x, k_e = jax.random.split(key)
    x = jax.random.normal(k_x, (num_nodes, in_channels), jnp.float32)
    ring_src = jnp.arange(num_nodes, dtype=jnp.int32)
    ring_dst = (ring_src + 1) % num_nodes
    extra_src = jax.random.randint(k_e, (num_extra_edges,), 0, num_nodes,
                                   jnp.int32)
    extra_dst = (extra_src + 5) % num_nodes
    edge_index = jnp.stack([
        jnp.concatenate([ring_src, extra_src]),
        jnp.concatenate([ring_dst, extra_dst]),
    ])
    return x, build_normalized_adjacency(edge_index, num_nodes)


def _reference(x, a_hat, w1, b1, w2, b2):
    h = jnp.maximum(a_hat @ (x @ w1) + b1, 0.0)
    return a_hat @ (h @ w2) + b2


if __name__ == "__main__":
    key = jax.random.PRNGKey(0)
    k_g1, k_g2, k_g3, k_w1, k_w2 = jax.random.split(key, 5)

    # Shapes consistent with the module: 6 node features (Time, Length,
    # Win Size, Source/Destination/Protocol encodings), hidden=64, 2 classes.
    in_channels, hidden, out_channels = 6, 64, 2
    w1 = glorot(k_w1, (in_channels, hidden))
    b1 = jnp.zeros((hidden,), jnp.float32)
    w2 = glorot(k_w2, (hidden, out_channels))
    b2 = jnp.zeros((out_channels,), jnp.float32)

    # Case 1: tiny graph (N=16) -> fused single-launch path (A resident,
    # H never leaves VMEM).
    x1, a1 = _make_graph(k_g1, 16, 8, in_channels)
    out1 = jax.block_until_ready(gcn_forward(x1, a1, w1, b1, w2, b2))
    ref1 = _reference(x1, a1, w1, b1, w2, b2)
    assert out1.shape == (16, out_channels)
    assert jnp.allclose(out1, ref1, atol=5e-2, rtol=5e-2), \
        float(jnp.max(jnp.abs(out1 - ref1)))

    # Case 2: mid graph with explicit 128x128 A tiles -> streamed-A path,
    # 3x3 grid (300 -> 384 on both axes), resident XW, f32 accumulator.
    x2, a2 = _make_graph(k_g2, 300, 64, in_channels)
    out2 = jax.block_until_ready(
        gcn_forward(x2, a2, w1, b1, w2, b2, tm=128, tk=128))
    ref2 = _reference(x2, a2, w1, b1, w2, b2)
    assert out2.shape == (300, out_channels)
    assert jnp.allclose(out2, ref2, atol=5e-2, rtol=5e-2), \
        float(jnp.max(jnp.abs(out2 - ref2)))

    # Case 3: larger graph (N=2560) -> auto-tiled streamed-A path with the
    # big, balanced contraction tiles and triple-buffered A stream.
    x3, a3 = _make_graph(k_g3, 2560, 512, in_channels)
    out3 = jax.block_until_ready(gcn_forward(x3, a3, w1, b1, w2, b2))
    ref3 = _reference(x3, a3, w1, b1, w2, b2)
    assert out3.shape == (2560, out_channels)
    assert jnp.allclose(out3, ref3, atol=5e-2, rtol=5e-2), \
        float(jnp.max(jnp.abs(out3 - ref3)))

    print("KERNEL_OK")
</pallas_src>

<mosaic_0001>
module attributes {stable_mosaic.version = 11 : i64} {
  func.func @_fused_kernel(%arg0: memref<128x128xbf16, #tpu.memory_space<vmem>>, %arg1: memref<128x64xbf16, #tpu.memory_space<vmem>>, %arg2: memref<1x64xf32, #tpu.memory_space<vmem>>, %arg3: memref<64x128xbf16, #tpu.memory_space<vmem>>, %arg4: memref<1x128xf32, #tpu.memory_space<vmem>>, %arg5: memref<128x128xf32, #tpu.memory_space<vmem>>) attributes {dimension_semantics = [], scalar_prefetch = 0 : i64, scratch_operands = 0 : i64, tpu.core_type = #tpu.core_type<tc>} {
    %c0 = arith.constant 0 : index
    %c0_0 = arith.constant 0 : index
    %0 = vector.load %arg0[%c0, %c0_0] : memref<128x128xbf16, #tpu.memory_space<vmem>>, vector<128x128xbf16>
    %c0_1 = arith.constant 0 : index
    %c0_2 = arith.constant 0 : index
    %1 = vector.load %arg1[%c0_1, %c0_2] : memref<128x64xbf16, #tpu.memory_space<vmem>>, vector<128x64xbf16>
    %cst = arith.constant dense<0.000000e+00> : vector<128x64xf32>
    %2 = tpu.matmul %0, %1, %cst {dimension_numbers = #tpu.dot_dimension_numbers<[1], [0], [0], [1], [0, 0, 1, 1], [], []>} : vector<128x128xbf16>, vector<128x64xbf16>, vector<128x64xf32> -> vector<128x64xf32>
    %c0_3 = arith.constant 0 : index
    %c0_4 = arith.constant 0 : index
    %3 = vector.load %arg2[%c0_3, %c0_4] : memref<1x64xf32, #tpu.memory_space<vmem>>, vector<1x64xf32>
    %4 = vector.broadcast %3 : vector<1x64xf32> to vector<128x64xf32>
    %5 = arith.addf %2, %4 : vector<128x64xf32>
    %cst_5 = arith.constant 0.000000e+00 : f32
    %6 = vector.broadcast %cst_5 : f32 to vector<128x64xf32>
    %7 = arith.maximumf %5, %6 : vector<128x64xf32>
    %8 = arith.truncf %7 : vector<128x64xf32> to vector<128x64xbf16>
    %c0_6 = arith.constant 0 : index
    %c0_7 = arith.constant 0 : index
    %9 = vector.load %arg3[%c0_6, %c0_7] : memref<64x128xbf16, #tpu.memory_space<vmem>>, vector<64x128xbf16>
    %cst_8 = arith.constant dense<0.000000e+00> : vector<128x128xf32>
    %10 = tpu.matmul %8, %9, %cst_8 {dimension_numbers = #tpu.dot_dimension_numbers<[1], [0], [0], [1], [0, 0, 1, 1], [], []>} : vector<128x64xbf16>, vector<64x128xbf16>, vector<128x128xf32> -> vector<128x128xf32>
    %11 = arith.truncf %10 : vector<128x128xf32> to vector<128x128xbf16>
    %cst_9 = arith.constant dense<0.000000e+00> : vector<128x128xf32>
    %12 = tpu.matmul %0, %11, %cst_9 {dimension_numbers = #tpu.dot_dimension_numbers<[1], [0], [0], [1], [0, 0, 1, 1], [], []>} : vector<128x128xbf16>, vector<128x128xbf16>, vector<128x128xf32> -> vector<128x128xf32>
    %c0_10 = arith.constant 0 : index
    %c0_11 = arith.constant 0 : index
    %13 = vector.load %arg4[%c0_10, %c0_11] : memref<1x128xf32, #tpu.memory_space<vmem>>, vector<1x128xf32>
    %14 = vector.broadcast %13 : vector<1x128xf32> to vector<128x128xf32>
    %15 = arith.addf %12, %14 : vector<128x128xf32>
    %c0_12 = arith.constant 0 : index
    %c0_13 = arith.constant 0 : index
    %16 = vector.load %arg5[%c0_12, %c0_13] : memref<128x128xf32, #tpu.memory_space<vmem>>, vector<128x128xf32>
    tpu.vector_store %arg5[%c0_12, %c0_13], %15 {strides = array<i32>} : memref<128x128xf32, #tpu.memory_space<vmem>>, vector<128x128xf32>,
    return
  }
}

</mosaic_0001>

<llo_original>
// kernel: gcn_forward.1
$region0: #{gcn_forward.1}
  #allocation0 [shape = 'u32[]', space=smem, size = 0x4, offset = 0x4, fixed_abs, tag = 'smem constant byte address 0x4 - core index']
  #allocation1 [shape = 'u32[144,128]{1,0:T(1,128)}', space=vmem, size = 0x12000, scoped, tag = 'internal scratch']
  %s0 = inlined_call_operand.vmem [shape: bf16[128,128], index: 0, kind: input, shape index: {}]
  %s1 = inlined_call_operand.vmem [shape: bf16[128,64], index: 1, kind: input, shape index: {}]
  %s2 = inlined_call_operand.vmem [shape: f32[1,64], index: 2, kind: input, shape index: {}]
  %s3 = inlined_call_operand.vmem [shape: bf16[64,128], index: 3, kind: input, shape index: {}]
  %s4 = inlined_call_operand.vmem [shape: f32[1,128], index: 4, kind: input, shape index: {}]
  %s5 = inlined_call_operand.vmem [shape: f32[128,128], index: 5, kind: output, shape index: {}]
  %s6 = sld [smem:[#allocation0]]
  $region30: #{gcn_forward.1} parent=0
    _
  %s8 = ssub.s32 1, %s6
  %s9 = scalar_select 0, %s8, %s6
  // Predicated region
  $region2: #{gcn_forward.1} parent=0 // pred_check
    _
  $region3: #{gcn_forward.1} parent=0 // pred_check_branch
    %11 = sbr.rel (0) target = $region5
  $region4: #{gcn_forward.1} parent=0 // pred_region
    _
  $region5: #{gcn_forward.1} parent=0 // pred_fallthru
    _
  // Predicated region
  $region6: #{gcn_forward.1} parent=0 // pred_check
    _
  $region7: #{gcn_forward.1} parent=0 // pred_check_branch
    %13 = sbr.rel (0) target = $region9
  $region8: #{gcn_forward.1} parent=0 // pred_region
    _
  $region9: #{gcn_forward.1} parent=0 // pred_fallthru
    _
  // Predicated region
  $region10: #{gcn_forward.1} parent=0 // pred_check
    _
  $region11: #{gcn_forward.1} parent=0 // pred_check_branch
    %15 = sbr.rel (0) target = $region13
  $region12: #{gcn_forward.1} parent=0 // pred_region
    _
  $region13: #{gcn_forward.1} parent=0 // pred_fallthru
    _
  // Predicated region
  $region14: #{gcn_forward.1} parent=0 // pred_check
    _
  $region15: #{gcn_forward.1} parent=0 // pred_check_branch
    %17 = sbr.rel (0) target = $region17
  $region16: #{gcn_forward.1} parent=0 // pred_region
    _
  $region17: #{gcn_forward.1} parent=0 // pred_fallthru
    _
  // Predicated region
  $region18: #{gcn_forward.1} parent=0 // pred_check
    _
  $region19: #{gcn_forward.1} parent=0 // pred_check_branch
    %19 = sbr.rel (0) target = $region21
  $region20: #{gcn_forward.1} parent=0 // pred_region
    _
  $region21: #{gcn_forward.1} parent=0 // pred_fallthru
    _
  %v21 = vld [vmem:[%s0] sm:$0xf]
  %v22 = vld [vmem:[%s0 + $0x4] sm:$0xf]
  %v23 = vld [vmem:[%s0 + $0x8] sm:$0xf]
  %v24 = vld [vmem:[%s0 + $0xc] sm:$0xf]
  %v25 = vld [vmem:[%s0 + $0x10] sm:$0xf]
  %v26 = vld [vmem:[%s0 + $0x14] sm:$0xf]
  %v27 = vld [vmem:[%s0 + $0x18] sm:$0xf]
  %v28 = vld [vmem:[%s0 + $0x1c] sm:$0xf]
  %v29 = vld [vmem:[%s0 + $0x20] sm:$0xf]
  %v30 = vld [vmem:[%s0 + $0x24] sm:$0xf]
  %v31 = vld [vmem:[%s0 + $0x28] sm:$0xf]
  %v32 = vld [vmem:[%s0 + $0x2c] sm:$0xf]
  %v33 = vld [vmem:[%s0 + $0x30] sm:$0xf]
  %v34 = vld [vmem:[%s0 + $0x34] sm:$0xf]
  %v35 = vld [vmem:[%s0 + $0x38] sm:$0xf]
  %v36 = vld [vmem:[%s0 + $0x3c] sm:$0xf]
  %v37 = vld [vmem:[%s1] sm:$0xf]
  %v38 = vld [vmem:[%s1 + $0x4] sm:$0xf]
  %v39 = vld [vmem:[%s1 + $0x8] sm:$0xf]
  %v40 = vld [vmem:[%s1 + $0xc] sm:$0xf]
  %v41 = vld [vmem:[%s1 + $0x10] sm:$0xf]
  %v42 = vld [vmem:[%s1 + $0x14] sm:$0xf]
  %v43 = vld [vmem:[%s1 + $0x18] sm:$0xf]
  %v44 = vld [vmem:[%s1 + $0x1c] sm:$0xf]
  %v45 = vld [vmem:[%s1 + $0x20] sm:$0xf]
  %v46 = vld [vmem:[%s1 + $0x24] sm:$0xf]
  %v47 = vld [vmem:[%s1 + $0x28] sm:$0xf]
  %v48 = vld [vmem:[%s1 + $0x2c] sm:$0xf]
  %v49 = vld [vmem:[%s1 + $0x30] sm:$0xf]
  %v50 = vld [vmem:[%s1 + $0x34] sm:$0xf]
  %v51 = vld [vmem:[%s1 + $0x38] sm:$0xf]
  %v52 = vld [vmem:[%s1 + $0x3c] sm:$0xf]
  %v53 = vld [vmem:[%s2] sm:$0x1]
  %v55 = vlaneseq
  %v56 = vshrl.u32 %v55, 7
  %v57 = vsub.s32 0, %v56
  %v58 = vrot.slane %v53, %v57
  %v76 = vunpack.c.l.b16 %v21
  %v77 = vunpack.c.l.b16 %v22
  %v78 = vunpack.c.l.b16 %v23
  %v79 = vunpack.c.l.b16 %v24
  %v80 = vunpack.c.l.b16 %v25
  %v81 = vunpack.c.l.b16 %v26
  %v82 = vunpack.c.l.b16 %v27
  %v83 = vunpack.c.l.b16 %v28
  %v84 = vunpack.c.l.b16 %v29
  %v85 = vunpack.c.l.b16 %v30
  %v86 = vunpack.c.l.b16 %v31
  %v87 = vunpack.c.l.b16 %v32
  %v88 = vunpack.c.l.b16 %v33
  %v89 = vunpack.c.l.b16 %v34
  %v90 = vunpack.c.l.b16 %v35
  %v91 = vunpack.c.l.b16 %v36
  %v92 = vpack.c.b16 %v77, %v76
  %v93 = vpack.c.b16 %v79, %v78
  %v94 = vpack.c.b16 %v81, %v80
  %v95 = vpack.c.b16 %v83, %v82
  %v96 = vpack.c.b16 %v85, %v84
  %v97 = vpack.c.b16 %v87, %v86
  %v98 = vpack.c.b16 %v89, %v88
  %v99 = vpack.c.b16 %v91, %v90
  %v124 = vunpack.c.l.b16 %v37
  %v125 = vunpack.c.l.b16 %v38
  %v126 = vunpack.c.l.b16 %v39
  %v127 = vunpack.c.l.b16 %v40
  %v128 = vunpack.c.l.b16 %v41
  %v129 = vunpack.c.l.b16 %v42
  %v130 = vunpack.c.l.b16 %v43
  %v131 = vunpack.c.l.b16 %v44
  %v132 = vunpack.c.l.b16 %v45
  %v133 = vunpack.c.l.b16 %v46
  %v134 = vunpack.c.l.b16 %v47
  %v135 = vunpack.c.l.b16 %v48
  %v136 = vunpack.c.l.b16 %v49
  %v137 = vunpack.c.l.b16 %v50
  %v138 = vunpack.c.l.b16 %v51
  %v139 = vunpack.c.l.b16 %v52
  %v140 = vpack.c.b16 %v125, %v124
  %v141 = vpack.c.b16 %v127, %v126
  %v142 = vpack.c.b16 %v129, %v128
  %v143 = vpack.c.b16 %v131, %v130
  %v144 = vpack.c.b16 %v133, %v132
  %v145 = vpack.c.b16 %v135, %v134
  %v146 = vpack.c.b16 %v137, %v136
  %v147 = vpack.c.b16 %v139, %v138
  %156 = vmatprep.subr.bf16.mxu0 0
  %157 = vmatpush1.bf16.msra.mxu0 %v140
  %158 = vmatprep.subr.bf16.mxu0 0
  %159 = vmatpush1.bf16.msra.mxu0 %v141
  %160 = vmatprep.subr.bf16.mxu0 0
  %161 = vmatpush1.bf16.msra.mxu0 %v142
  %162 = vmatprep.subr.bf16.mxu0 0
  %163 = vmatpush1.bf16.msra.mxu0 %v143
  %164 = vmatprep.subr.bf16.mxu0 0
  %165 = vmatpush1.bf16.msra.mxu0 %v144
  %166 = vmatprep.subr.bf16.mxu0 0
  %167 = vmatpush1.bf16.msra.mxu0 %v145
  %168 = vmatprep.subr.bf16.mxu0 0
  %169 = vmatpush1.bf16.msra.mxu0 %v146
  %170 = vmatprep.subr.bf16.mxu0 0
  %171 = vmatpush1.bf16.msra.mxu0 %v147
  %172 = vmatprep.subr.bf16.mxu0 0
  %173 = vmatpush1.bf16.msra.mxu0 0
  %174 = vmatprep.subr.bf16.mxu0 0
  %175 = vmatpush1.bf16.msra.mxu0 0
  %176 = vmatprep.subr.bf16.mxu0 0
  %177 = vmatpush1.bf16.msra.mxu0 0
  %178 = vmatprep.subr.bf16.mxu0 0
  %179 = vmatpush1.bf16.msra.mxu0 0
  %180 = vmatprep.subr.bf16.mxu0 0
  %181 = vmatpush1.bf16.msra.mxu0 0
  %182 = vmatprep.subr.bf16.mxu0 0
  %183 = vmatpush1.bf16.msra.mxu0 0
  %184 = vmatprep.subr.bf16.mxu0 0
  %185 = vmatpush1.bf16.msra.mxu0 0
  %186 = vmatprep.subr.bf16.mxu0 0
  %187 = vmatpush1.bf16.msra.mxu0 0
  %188 = vmatprep.mubr.bf16.mxu0 0
  %189 = vmatmul.mubr.bf16.gmra.mrb[0].mxu0 %v92
  %v190 = vpop.f32.mrb[0].mxu0
  %v191 = vadd.f32 %v58, %v190
  %v192 = vpop.f32.mrb[0].mxu0
  %v193 = vpop.f32.mrb[0].mxu0
  %v194 = vadd.f32 %v58, %v193
  %v195 = vpop.f32.mrb[0].mxu0
  %196 = vmatprep.mubr.bf16.mxu0 0
  %197 = vmatmul.mubr.bf16.gmra.mrb[0].mxu0 %v93
  %v198 = vpop.f32.mrb[0].mxu0
  %v199 = vadd.f32 %v58, %v198
  %v200 = vpop.f32.mrb[0].mxu0
  %v201 = vpop.f32.mrb[0].mxu0
  %v202 = vadd.f32 %v58, %v201
  %v203 = vpop.f32.mrb[0].mxu0
  %204 = vmatprep.mubr.bf16.mxu0 0
  %205 = vmatmul.mubr.bf16.gmra.mrb[0].mxu0 %v94
  %v206 = vpop.f32.mrb[0].mxu0
  %v207 = vadd.f32 %v58, %v206
  %v208 = vpop.f32.mrb[0].mxu0
  %v209 = vpop.f32.mrb[0].mxu0
  %v210 = vadd.f32 %v58, %v209
  %v211 = vpop.f32.mrb[0].mxu0
  %212 = vmatprep.mubr.bf16.mxu0 0
  %213 = vmatmul.mubr.bf16.gmra.mrb[0].mxu0 %v95
  %v214 = vpop.f32.mrb[0].mxu0
  %v215 = vadd.f32 %v58, %v214
  %v216 = vpop.f32.mrb[0].mxu0
  %v217 = vpop.f32.mrb[0].mxu0
  %v218 = vadd.f32 %v58, %v217
  %v219 = vpop.f32.mrb[0].mxu0
  %220 = vmatprep.mubr.bf16.mxu0 0
  %221 = vmatmul.mubr.bf16.gmra.mrb[0].mxu0 %v96
  %v222 = vpop.f32.mrb[0].mxu0
  %v223 = vadd.f32 %v58, %v222
  %v224 = vpop.f32.mrb[0].mxu0
  %v225 = vpop.f32.mrb[0].mxu0
  %v226 = vadd.f32 %v58, %v225
  %v227 = vpop.f32.mrb[0].mxu0
  %228 = vmatprep.mubr.bf16.mxu0 0
  %229 = vmatmul.mubr.bf16.gmra.mrb[0].mxu0 %v97
  %v230 = vpop.f32.mrb[0].mxu0
  %v231 = vadd.f32 %v58, %v230
  %v232 = vpop.f32.mrb[0].mxu0
  %v233 = vpop.f32.mrb[0].mxu0
  %v234 = vadd.f32 %v58, %v233
  %v235 = vpop.f32.mrb[0].mxu0
  %236 = vmatprep.mubr.bf16.mxu0 0
  %237 = vmatmul.mubr.bf16.gmra.mrb[0].mxu0 %v98
  %v238 = vpop.f32.mrb[0].mxu0
  %v239 = vadd.f32 %v58, %v238
  %v240 = vpop.f32.mrb[0].mxu0
  %v241 = vpop.f32.mrb[0].mxu0
  %v242 = vadd.f32 %v58, %v241
  %v243 = vpop.f32.mrb[0].mxu0
  %244 = vmatprep.mubr.bf16.mxu0 0
  %245 = vmatmul.mubr.bf16.gmra.mrb[0].mxu0 %v99
  %v246 = vpop.f32.mrb[0].mxu0
  %v247 = vadd.f32 %v58, %v246
  %v248 = vpop.f32.mrb[0].mxu0
  %v249 = vpop.f32.mrb[0].mxu0
  %v250 = vadd.f32 %v58, %v249
  %v251 = vpop.f32.mrb[0].mxu0
  %252 = vdwg.mxu0
  %v253 = vmax.f32 %v191, 0.0
  %v254 = vmax.f32 %v194, 0.0
  %v255 = vmax.f32 %v199, 0.0
  %v256 = vmax.f32 %v202, 0.0
  %v257 = vmax.f32 %v207, 0.0
  %v258 = vmax.f32 %v210, 0.0
  %v259 = vmax.f32 %v215, 0.0
  %v260 = vmax.f32 %v218, 0.0
  %v261 = vmax.f32 %v223, 0.0
  %v262 = vmax.f32 %v226, 0.0
  %v263 = vmax.f32 %v231, 0.0
  %v264 = vmax.f32 %v234, 0.0
  %v265 = vmax.f32 %v239, 0.0
  %v266 = vmax.f32 %v242, 0.0
  %v267 = vmax.f32 %v247, 0.0
  %v268 = vmax.f32 %v250, 0.0
  %v269 = vpack.c.bf16 %v254, %v253
  %v270 = vpack.c.bf16 %v256, %v255
  %v271 = vpack.c.bf16 %v258, %v257
  %v272 = vpack.c.bf16 %v260, %v259
  %v273 = vpack.c.bf16 %v262, %v261
  %v274 = vpack.c.bf16 %v264, %v263
  %v275 = vpack.c.bf16 %v266, %v265
  %v276 = vpack.c.bf16 %v268, %v267
  %v277 = vld [vmem:[%s3] sm:$0xf]
  %v278 = vld [vmem:[%s3 + $0x4] sm:$0xf]
  %v279 = vld [vmem:[%s3 + $0x8] sm:$0xf]
  %v280 = vld [vmem:[%s3 + $0xc] sm:$0xf]
  %v281 = vld [vmem:[%s3 + $0x10] sm:$0xf]
  %v282 = vld [vmem:[%s3 + $0x14] sm:$0xf]
  %v283 = vld [vmem:[%s3 + $0x18] sm:$0xf]
  %v284 = vld [vmem:[%s3 + $0x1c] sm:$0xf]
  %v293 = vunpack.c.l.b16 %v277
  %v294 = vunpack.c.l.b16 %v278
  %v295 = vunpack.c.l.b16 %v279
  %v296 = vunpack.c.l.b16 %v280
  %v297 = vunpack.c.l.b16 %v281
  %v298 = vunpack.c.l.b16 %v282
  %v299 = vunpack.c.l.b16 %v283
  %v300 = vunpack.c.l.b16 %v284
  %v301 = vpack.c.b16 %v294, %v293
  %v302 = vpack.c.b16 %v296, %v295
  %v303 = vpack.c.b16 %v298, %v297
  %v304 = vpack.c.b16 %v300, %v299
  %vm309 = vcmask 523264
  %v311 = vsel %vm309, %v269, 0
  %v314 = vsel %vm309, %v270, 0
  %v317 = vsel %vm309, %v271, 0
  %v320 = vsel %vm309, %v272, 0
  %v323 = vsel %vm309, %v273, 0
  %v326 = vsel %vm309, %v274, 0
  %v329 = vsel %vm309, %v275, 0
  %v332 = vsel %vm309, %v276, 0
  %334 = vmatprep.subr.bf16.mxu0 0
  %335 = vmatpush1.bf16.msra.mxu0 %v301
  %336 = vmatprep.subr.bf16.mxu0 0
  %337 = vmatpush1.bf16.msra.mxu0 %v302
  %338 = vmatprep.subr.bf16.mxu0 0
  %339 = vmatpush1.bf16.msra.mxu0 %v303
  %340 = vmatprep.subr.bf16.mxu0 0
  %341 = vmatpush1.bf16.msra.mxu0 %v304
  %342 = vmatprep.subr.bf16.mxu0 0
  %343 = vmatpush1.bf16.msra.mxu0 0
  %344 = vmatprep.subr.bf16.mxu0 0
  %345 = vmatpush1.bf16.msra.mxu0 0
  %346 = vmatprep.subr.bf16.mxu0 0
  %347 = vmatpush1.bf16.msra.mxu0 0
  %348 = vmatprep.subr.bf16.mxu0 0
  %349 = vmatpush1.bf16.msra.mxu0 0
  %350 = vmatprep.subr.bf16.mxu0 0
  %351 = vmatpush1.bf16.msra.mxu0 0
  %352 = vmatprep.subr.bf16.mxu0 0
  %353 = vmatpush1.bf16.msra.mxu0 0
  %354 = vmatprep.subr.bf16.mxu0 0
  %355 = vmatpush1.bf16.msra.mxu0 0
  %356 = vmatprep.subr.bf16.mxu0 0
  %357 = vmatpush1.bf16.msra.mxu0 0
  %358 = vmatprep.subr.bf16.mxu0 0
  %359 = vmatpush1.bf16.msra.mxu0 0
  %360 = vmatprep.subr.bf16.mxu0 0
  %361 = vmatpush1.bf16.msra.mxu0 0
  %362 = vmatprep.subr.bf16.mxu0 0
  %363 = vmatpush1.bf16.msra.mxu0 0
  %364 = vmatprep.subr.bf16.mxu0 0
  %365 = vmatpush1.bf16.msra.mxu0 0
  %366 = vmatprep.mubr.bf16.mxu0 0
  %367 = vmatmul.mubr.bf16.gmra.mrb[0].mxu0 %v311
  %v368 = vpop.f32.mrb[0].mxu0
  %v369 = vadd.f32 0.0, %v368
  %v370 = vpop.f32.mrb[0].mxu0
  %v371 = vpop.f32.mrb[0].mxu0
  %v372 = vadd.f32 0.0, %v371
  %v373 = vpop.f32.mrb[0].mxu0
  %374 = vmatprep.mubr.bf16.mxu0 0
  %375 = vmatmul.mubr.bf16.gmra.mrb[0].mxu0 %v314
  %v376 = vpop.f32.mrb[0].mxu0
  %v377 = vadd.f32 0.0, %v376
  %v378 = vpop.f32.mrb[0].mxu0
  %v379 = vpop.f32.mrb[0].mxu0
  %v380 = vadd.f32 0.0, %v379
  %v381 = vpop.f32.mrb[0].mxu0
  %382 = vmatprep.mubr.bf16.mxu0 0
  %383 = vmatmul.mubr.bf16.gmra.mrb[0].mxu0 %v317
  %v384 = vpop.f32.mrb[0].mxu0
  %v385 = vadd.f32 0.0, %v384
  %v386 = vpop.f32.mrb[0].mxu0
  %v387 = vpop.f32.mrb[0].mxu0
  %v388 = vadd.f32 0.0, %v387
  %v389 = vpop.f32.mrb[0].mxu0
  %390 = vmatprep.mubr.bf16.mxu0 0
  %391 = vmatmul.mubr.bf16.gmra.mrb[0].mxu0 %v320
  %v392 = vpop.f32.mrb[0].mxu0
  %v393 = vadd.f32 0.0, %v392
  %v394 = vpop.f32.mrb[0].mxu0
  %v395 = vpop.f32.mrb[0].mxu0
  %v396 = vadd.f32 0.0, %v395
  %v397 = vpop.f32.mrb[0].mxu0
  %398 = vmatprep.mubr.bf16.mxu0 0
  %399 = vmatmul.mubr.bf16.gmra.mrb[0].mxu0 %v323
  %v400 = vpop.f32.mrb[0].mxu0
  %v401 = vadd.f32 0.0, %v400
  %v402 = vpop.f32.mrb[0].mxu0
  %v403 = vpop.f32.mrb[0].mxu0
  %v404 = vadd.f32 0.0, %v403
  %v405 = vpop.f32.mrb[0].mxu0
  %406 = vmatprep.mubr.bf16.mxu0 0
  %407 = vmatmul.mubr.bf16.gmra.mrb[0].mxu0 %v326
  %v408 = vpop.f32.mrb[0].mxu0
  %v409 = vadd.f32 0.0, %v408
  %v410 = vpop.f32.mrb[0].mxu0
  %v411 = vpop.f32.mrb[0].mxu0
  %v412 = vadd.f32 0.0, %v411
  %v413 = vpop.f32.mrb[0].mxu0
  %414 = vmatprep.mubr.bf16.mxu0 0
  %415 = vmatmul.mubr.bf16.gmra.mrb[0].mxu0 %v329
  %v416 = vpop.f32.mrb[0].mxu0
  %v417 = vadd.f32 0.0, %v416
  %v418 = vpop.f32.mrb[0].mxu0
  %v419 = vpop.f32.mrb[0].mxu0
  %v420 = vadd.f32 0.0, %v419
  %v421 = vpop.f32.mrb[0].mxu0
  %422 = vmatprep.mubr.bf16.mxu0 0
  %423 = vmatmul.mubr.bf16.gmra.mrb[0].mxu0 %v332
  %v424 = vpop.f32.mrb[0].mxu0
  %v425 = vadd.f32 0.0, %v424
  %v426 = vpop.f32.mrb[0].mxu0
  %v427 = vpop.f32.mrb[0].mxu0
  %v428 = vadd.f32 0.0, %v427
  %v429 = vpop.f32.mrb[0].mxu0
  %430 = vdwg.mxu0
  %v431 = vpack.c.bf16 %v372, %v369
  %v432 = vpack.c.bf16 %v380, %v377
  %v433 = vpack.c.bf16 %v388, %v385
  %v434 = vpack.c.bf16 %v396, %v393
  %v435 = vpack.c.bf16 %v404, %v401
  %v436 = vpack.c.bf16 %v412, %v409
  %v437 = vpack.c.bf16 %v420, %v417
  %v438 = vpack.c.bf16 %v428, %v425
  %v439 = vld [vmem:[%s4] sm:$0x1]
  %v441 = vlaneseq
  %v442 = vshrl.u32 %v441, 7
  %v443 = vsub.s32 0, %v442
  %v444 = vrot.slane %v439, %v443
  %446 = vmatprep.subr.bf16.mxu0 0
  %447 = vmatpush1.bf16.msra.mxu0 %v431
  %448 = vmatprep.subr.bf16.mxu0 0
  %449 = vmatpush1.bf16.msra.mxu0 %v432
  %450 = vmatprep.subr.bf16.mxu0 0
  %451 = vmatpush1.bf16.msra.mxu0 %v433
  %452 = vmatprep.subr.bf16.mxu0 0
  %453 = vmatpush1.bf16.msra.mxu0 %v434
  %454 = vmatprep.subr.bf16.mxu0 0
  %455 = vmatpush1.bf16.msra.mxu0 %v435
  %456 = vmatprep.subr.bf16.mxu0 0
  %457 = vmatpush1.bf16.msra.mxu0 %v436
  %458 = vmatprep.subr.bf16.mxu0 0
  %459 = vmatpush1.bf16.msra.mxu0 %v437
  %460 = vmatprep.subr.bf16.mxu0 0
  %461 = vmatpush1.bf16.msra.mxu0 %v438
  %462 = vmatprep.subr.bf16.mxu0 0
  %463 = vmatpush1.bf16.msra.mxu0 0
  %464 = vmatprep.subr.bf16.mxu0 0
  %465 = vmatpush1.bf16.msra.mxu0 0
  %466 = vmatprep.subr.bf16.mxu0 0
  %467 = vmatpush1.bf16.msra.mxu0 0
  %468 = vmatprep.subr.bf16.mxu0 0
  %469 = vmatpush1.bf16.msra.mxu0 0
  %470 = vmatprep.subr.bf16.mxu0 0
  %471 = vmatpush1.bf16.msra.mxu0 0
  %472 = vmatprep.subr.bf16.mxu0 0
  %473 = vmatpush1.bf16.msra.mxu0 0
  %474 = vmatprep.subr.bf16.mxu0 0
  %475 = vmatpush1.bf16.msra.mxu0 0
  %476 = vmatprep.subr.bf16.mxu0 0
  %477 = vmatpush1.bf16.msra.mxu0 0
  %478 = vmatprep.mubr.bf16.mxu0 0
  %479 = vmatmul.mubr.bf16.gmra.mrb[0].mxu0 %v92
  %v480 = vpop.f32.mrb[0].mxu0
  %v481 = vadd.f32 %v444, %v480
  %v482 = vpop.f32.mrb[0].mxu0
  %v483 = vpop.f32.mrb[0].mxu0
  %v484 = vadd.f32 %v444, %v483
  %v485 = vpop.f32.mrb[0].mxu0
  %486 = vmatprep.mubr.bf16.mxu0 0
  %487 = vmatmul.mubr.bf16.gmra.mrb[0].mxu0 %v93
  %v488 = vpop.f32.mrb[0].mxu0
  %v489 = vadd.f32 %v444, %v488
  %v490 = vpop.f32.mrb[0].mxu0
  %v491 = vpop.f32.mrb[0].mxu0
  %v492 = vadd.f32 %v444, %v491
  %v493 = vpop.f32.mrb[0].mxu0
  %494 = vmatprep.mubr.bf16.mxu0 0
  %495 = vmatmul.mubr.bf16.gmra.mrb[0].mxu0 %v94
  %v496 = vpop.f32.mrb[0].mxu0
  %v497 = vadd.f32 %v444, %v496
  %v498 = vpop.f32.mrb[0].mxu0
  %v499 = vpop.f32.mrb[0].mxu0
  %v500 = vadd.f32 %v444, %v499
  %v501 = vpop.f32.mrb[0].mxu0
  %502 = vmatprep.mubr.bf16.mxu0 0
  %503 = vmatmul.mubr.bf16.gmra.mrb[0].mxu0 %v95
  %v504 = vpop.f32.mrb[0].mxu0
  %v505 = vadd.f32 %v444, %v504
  %v506 = vpop.f32.mrb[0].mxu0
  %v507 = vpop.f32.mrb[0].mxu0
  %v508 = vadd.f32 %v444, %v507
  %v509 = vpop.f32.mrb[0].mxu0
  %510 = vmatprep.mubr.bf16.mxu0 0
  %511 = vmatmul.mubr.bf16.gmra.mrb[0].mxu0 %v96
  %v512 = vpop.f32.mrb[0].mxu0
  %v513 = vadd.f32 %v444, %v512
  %v514 = vpop.f32.mrb[0].mxu0
  %v515 = vpop.f32.mrb[0].mxu0
  %v516 = vadd.f32 %v444, %v515
  %v517 = vpop.f32.mrb[0].mxu0
  %518 = vmatprep.mubr.bf16.mxu0 0
  %519 = vmatmul.mubr.bf16.gmra.mrb[0].mxu0 %v97
  %v520 = vpop.f32.mrb[0].mxu0
  %v521 = vadd.f32 %v444, %v520
  %v522 = vpop.f32.mrb[0].mxu0
  %v523 = vpop.f32.mrb[0].mxu0
  %v524 = vadd.f32 %v444, %v523
  %v525 = vpop.f32.mrb[0].mxu0
  %526 = vmatprep.mubr.bf16.mxu0 0
  %527 = vmatmul.mubr.bf16.gmra.mrb[0].mxu0 %v98
  %v528 = vpop.f32.mrb[0].mxu0
  %v529 = vadd.f32 %v444, %v528
  %v530 = vpop.f32.mrb[0].mxu0
  %v531 = vpop.f32.mrb[0].mxu0
  %v532 = vadd.f32 %v444, %v531
  %v533 = vpop.f32.mrb[0].mxu0
  %534 = vmatprep.mubr.bf16.mxu0 0
  %535 = vmatmul.mubr.bf16.gmra.mrb[0].mxu0 %v99
  %v536 = vpop.f32.mrb[0].mxu0
  %v537 = vadd.f32 %v444, %v536
  %v538 = vpop.f32.mrb[0].mxu0
  %v539 = vpop.f32.mrb[0].mxu0
  %v540 = vadd.f32 %v444, %v539
  %v541 = vpop.f32.mrb[0].mxu0
  %542 = vdwg.mxu0
  %543 = vst [vmem:[%s5] sm:$0xff] %v481
  %544 = vst [vmem:[%s5 + $0x8] sm:$0xff] %v484
  %545 = vst [vmem:[%s5 + $0x10] sm:$0xff] %v489
  %546 = vst [vmem:[%s5 + $0x18] sm:$0xff] %v492
  %547 = vst [vmem:[%s5 + $0x20] sm:$0xff] %v497
  %548 = vst [vmem:[%s5 + $0x28] sm:$0xff] %v500
  %549 = vst [vmem:[%s5 + $0x30] sm:$0xff] %v505
  %550 = vst [vmem:[%s5 + $0x38] sm:$0xff] %v508
  %551 = vst [vmem:[%s5 + $0x40] sm:$0xff] %v513
  %552 = vst [vmem:[%s5 + $0x48] sm:$0xff] %v516
  %553 = vst [vmem:[%s5 + $0x50] sm:$0xff] %v521
  %554 = vst [vmem:[%s5 + $0x58] sm:$0xff] %v524
  %555 = vst [vmem:[%s5 + $0x60] sm:$0xff] %v529
  %556 = vst [vmem:[%s5 + $0x68] sm:$0xff] %v532
  %557 = vst [vmem:[%s5 + $0x70] sm:$0xff] %v537
  %558 = vst [vmem:[%s5 + $0x78] sm:$0xff] %v540
  // Predicated region
  $region22: #{gcn_forward.1} parent=0 // pred_check
    _
  $region23: #{gcn_forward.1} parent=0 // pred_check_branch
    %560 = sbr.rel (0) target = $region25
  $region24: #{gcn_forward.1} parent=0 // pred_region
    _
  $region25: #{gcn_forward.1} parent=0 // pred_fallthru
    _
  // Predicated region
  $region26: #{gcn_forward.1} parent=0 // pred_check
    _
  $region27: #{gcn_forward.1} parent=0 // pred_check_branch
    %562 = sbr.rel (0) target = $region29
  $region28: #{gcn_forward.1} parent=0 // pred_region
    _
  $region29: #{gcn_forward.1} parent=0 // pred_fallthru
    _

</llo_original>
